<compile_context>
chip_gen: v6e
topology: v6e:2x2x1
jax: 0.10.0
libtpu: 0.0.40
codegen_flags: <defaults>
</compile_context>

<pallas_src>
import functools

import jax
import jax.numpy as jnp
from jax import lax
from jax.experimental import pallas as pl
from jax.experimental.pallas import tpu as pltpu


def _linear_act_single_k_kernel(x_ref, w_ref, b_ref, o_ref, *, activation):
    # Whole K fits in one step: no accumulator scratch needed.
    # x_ref: (tm, K)  w_ref: (tn, K) [PyTorch (out, in) layout]  b_ref: (1, tn)
    acc = lax.dot_general(
        x_ref[...], w_ref[...],
        dimension_numbers=(((1,), (1,)), ((), ())),
        preferred_element_type=jnp.float32,
    )
    acc = acc + b_ref[...]
    if activation == "relu":
        acc = jnp.maximum(acc, 0.0)
    elif activation == "leaky_relu":
        acc = jnp.where(acc >= 0.0, acc, 0.01 * acc)
    o_ref[...] = acc.astype(o_ref.dtype)


def _linear_act_multi_k_kernel(x_ref, w_ref, b_ref, o_ref, acc_ref, *, activation):
    # x_ref: (tm, tk)  w_ref: (tn, tk)  b_ref: (1, tn)
    # o_ref: (tm, tn)  acc_ref: (tm, tn) f32
    k = pl.program_id(2)

    @pl.when(k == 0)
    def _init():
        acc_ref[...] = jnp.zeros_like(acc_ref)

    acc_ref[...] += lax.dot_general(
        x_ref[...], w_ref[...],
        dimension_numbers=(((1,), (1,)), ((), ())),
        preferred_element_type=jnp.float32,
    )

    @pl.when(k == pl.num_programs(2) - 1)
    def _finalize():
        out = acc_ref[...] + b_ref[...]
        if activation == "relu":
            out = jnp.maximum(out, 0.0)
        elif activation == "leaky_relu":
            out = jnp.where(out >= 0.0, out, 0.01 * out)
        o_ref[...] = out.astype(o_ref.dtype)


def _pick_tile(dim, preferred, align):
    """Largest multiple of `align` <= preferred that divides `dim`; else full dim.

    Falling back to the full dimension satisfies the TPU BlockSpec rule that a
    block dim must be divisible by the (8, 128) tiling OR equal the array dim.
    """
    if dim <= preferred or dim % align != 0:
        return dim
    t = (preferred // align) * align
    while t > 0 and dim % t != 0:
        t -= align
    return t if t > 0 else dim


@functools.partial(
    jax.jit, static_argnames=("tile_m", "tile_n", "tile_k", "activation")
)
def linear_layer(x, weight, bias, *, tile_m=256, tile_n=256, tile_k=512,
                 activation="relu"):
    """y = activation(x @ weight.T + bias); PyTorch nn.Linear + F.relu (eval).

    x:      (..., K) float32
    weight: (N, K)   float32  (PyTorch layout: (out_features, in_features))
    bias:   (N,)     float32
    """
    orig_shape = x.shape
    K = orig_shape[-1]
    N = weight.shape[0]
    x2d = x.reshape(-1, K)
    M = x2d.shape[0]
    b2d = bias.reshape(1, N)

    # Tile selection: tm multiple of 8 (f32 sublane), tn/tk multiples of 128
    # (lane) — or full extent when the dim is small / not aligned.
    tm = _pick_tile(M, tile_m, 8)
    tn = _pick_tile(N, tile_n, 128)
    tk = _pick_tile(K, tile_k, 128)

    gm, gn, gk = pl.cdiv(M, tm), pl.cdiv(N, tn), pl.cdiv(K, tk)

    itemsize = 4
    cost = pl.CostEstimate(
        flops=2 * M * N * K,
        transcendentals=0,
        bytes_accessed=itemsize * (M * K + N * K + N + M * N),
    )

    if gk == 1:
        # Single-K-step path: 2-D grid, no accumulator scratch, fused epilogue.
        vmem_bytes = itemsize * (2 * tm * K + 2 * tn * K + 2 * tn + 2 * tm * tn)
        vmem_limit = min(max(2 * vmem_bytes, 16 * 1024 * 1024), 64 * 1024 * 1024)
        out2d = pl.pallas_call(
            functools.partial(_linear_act_single_k_kernel, activation=activation),
            out_shape=jax.ShapeDtypeStruct((M, N), x.dtype),
            grid_spec=pltpu.PrefetchScalarGridSpec(
                num_scalar_prefetch=0,
                grid=(gm, gn),
                in_specs=[
                    pl.BlockSpec((tm, K), lambda i, j: (i, 0)),   # x tile
                    pl.BlockSpec((tn, K), lambda i, j: (j, 0)),   # weight tile (N, K)
                    pl.BlockSpec((1, tn), lambda i, j: (0, j)),   # bias tile
                ],
                out_specs=pl.BlockSpec((tm, tn), lambda i, j: (i, j)),
            ),
            compiler_params=pltpu.CompilerParams(
                dimension_semantics=("parallel", "parallel"),
                vmem_limit_bytes=vmem_limit,
            ),
            cost_estimate=cost,
        )(x2d, weight, b2d)
    else:
        # K-tiled path: 3-D grid with the reduction axis last + f32 accumulator.
        vmem_bytes = itemsize * (
            2 * tm * tk + 2 * tn * tk + 2 * tn + 2 * tm * tn + tm * tn
        )
        vmem_limit = min(max(2 * vmem_bytes, 16 * 1024 * 1024), 64 * 1024 * 1024)
        out2d = pl.pallas_call(
            functools.partial(_linear_act_multi_k_kernel, activation=activation),
            out_shape=jax.ShapeDtypeStruct((M, N), x.dtype),
            grid_spec=pltpu.PrefetchScalarGridSpec(
                num_scalar_prefetch=0,
                grid=(gm, gn, gk),
                in_specs=[
                    pl.BlockSpec((tm, tk), lambda i, j, k: (i, k)),  # x tile
                    pl.BlockSpec((tn, tk), lambda i, j, k: (j, k)),  # weight tile
                    pl.BlockSpec((1, tn), lambda i, j, k: (0, j)),   # bias tile
                ],
                out_specs=pl.BlockSpec((tm, tn), lambda i, j, k: (i, j)),
                scratch_shapes=[pltpu.VMEM((tm, tn), jnp.float32)],
            ),
            compiler_params=pltpu.CompilerParams(
                dimension_semantics=("parallel", "parallel", "arbitrary"),
                vmem_limit_bytes=vmem_limit,
            ),
            cost_estimate=cost,
        )(x2d, weight, b2d)

    return out2d.reshape(orig_shape[:-1] + (N,))


if __name__ == "__main__":
    key = jax.random.PRNGKey(0)
    k_x, k_w, k_b = jax.random.split(key, 3)

    batch = 8            # rows fed through the linear layer
    input_size = 32
    output_size = 16

    x = jax.random.normal(k_x, (batch, input_size), dtype=jnp.float32)
    # Deterministic synthetic parameters (same shapes as nn.Linear(input_size, output_size))
    bound = 1.0 / jnp.sqrt(input_size)
    weight = jax.random.uniform(
        k_w, (output_size, input_size), minval=-bound, maxval=bound, dtype=jnp.float32
    )
    bias = jax.random.uniform(
        k_b, (output_size,), minval=-bound, maxval=bound, dtype=jnp.float32
    )

    out = linear_layer(x, weight, bias)
    out = jax.block_until_ready(out)

    # Reference check against plain JAX (same math as the PyTorch forward in eval mode)
    ref = jnp.maximum(x @ weight.T + bias, 0.0)
    assert out.shape == (batch, output_size)
    assert jnp.allclose(out, ref, atol=1e-5, rtol=1e-5)

    print("KERNEL_OK")
</pallas_src>

<mosaic_0001>
module attributes {stable_mosaic.version = 11 : i64} {
  func.func @_linear_act_single_k_kernel(%arg0: i32, %arg1: i32, %arg2: memref<8x32xf32, #tpu.memory_space<vmem>>, %arg3: memref<16x32xf32, #tpu.memory_space<vmem>>, %arg4: memref<1x16xf32, #tpu.memory_space<vmem>>, %arg5: memref<8x16xf32, #tpu.memory_space<vmem>>) attributes {dimension_semantics = [#tpu.dimension_semantics<parallel>, #tpu.dimension_semantics<parallel>], iteration_bounds = array<i64: 1, 1>, scalar_prefetch = 0 : i64, scratch_operands = 0 : i64, tpu.core_type = #tpu.core_type<tc>, window_params = [{transform_indices = @transform_0, window_bounds = array<i64: 8, 32>}, {transform_indices = @transform_1, window_bounds = array<i64: 16, 32>}, {transform_indices = @transform_2, window_bounds = array<i64: 1, 16>}, {transform_indices = @transform_3, window_bounds = array<i64: 8, 16>}]} {
    %c0 = arith.constant 0 : index
    %c0_0 = arith.constant 0 : index
    %0 = vector.load %arg2[%c0, %c0_0] : memref<8x32xf32, #tpu.memory_space<vmem>>, vector<8x32xf32>
    %c0_1 = arith.constant 0 : index
    %c0_2 = arith.constant 0 : index
    %1 = vector.load %arg3[%c0_1, %c0_2] : memref<16x32xf32, #tpu.memory_space<vmem>>, vector<16x32xf32>
    %cst = arith.constant dense<0.000000e+00> : vector<8x16xf32>
    %2 = tpu.matmul %0, %1, %cst {dimension_numbers = #tpu.dot_dimension_numbers<[1], [1], [0], [0], [0, 0, 1, 0], [], []>} : vector<8x32xf32>, vector<16x32xf32>, vector<8x16xf32> -> vector<8x16xf32>
    %c0_3 = arith.constant 0 : index
    %c0_4 = arith.constant 0 : index
    %3 = vector.load %arg4[%c0_3, %c0_4] : memref<1x16xf32, #tpu.memory_space<vmem>>, vector<1x16xf32>
    %4 = vector.broadcast %3 : vector<1x16xf32> to vector<8x16xf32>
    %5 = arith.addf %2, %4 : vector<8x16xf32>
    %cst_5 = arith.constant 0.000000e+00 : f32
    %6 = vector.broadcast %cst_5 : f32 to vector<8x16xf32>
    %7 = arith.maximumf %5, %6 : vector<8x16xf32>
    %c0_6 = arith.constant 0 : index
    %c0_7 = arith.constant 0 : index
    %8 = vector.load %arg5[%c0_6, %c0_7] : memref<8x16xf32, #tpu.memory_space<vmem>>, vector<8x16xf32>
    tpu.vector_store %arg5[%c0_6, %c0_7], %7 {strides = array<i32>} : memref<8x16xf32, #tpu.memory_space<vmem>>, vector<8x16xf32>,
    return
  }
  func.func @transform_0(%arg0: i32, %arg1: i32) -> (i32, i32) {
    %c0_i32 = arith.constant 0 : i32
    %c0_i32_0 = arith.constant 0 : i32
    return %arg0, %c0_i32 : i32, i32
  }
  func.func @transform_1(%arg0: i32, %arg1: i32) -> (i32, i32) {
    %c0_i32 = arith.constant 0 : i32
    %c0_i32_0 = arith.constant 0 : i32
    return %arg1, %c0_i32 : i32, i32
  }
  func.func @transform_2(%arg0: i32, %arg1: i32) -> (i32, i32) {
    %c0_i32 = arith.constant 0 : i32
    %c0_i32_0 = arith.constant 0 : i32
    return %c0_i32, %arg1 : i32, i32
  }
  func.func @transform_3(%arg0: i32, %arg1: i32) -> (i32, i32) {
    %c0_i32 = arith.constant 0 : i32
    return %arg0, %arg1 : i32, i32
  }
}

</mosaic_0001>

<llo_original>
// kernel: linear_layer.1
$region0: #{linear_layer.1}
  #allocation0 [shape = 'u32[]', space=smem, size = 0x4, offset = 0x4, fixed_abs, tag = 'smem constant byte address 0x4 - core index']
  #allocation1 [shape = 'u32[144,128]{1,0:T(1,128)}', space=vmem, size = 0x12000, scoped, tag = 'internal scratch']
  %s0 = inlined_call_operand.hbm [shape: f32[8,32], index: 0, kind: input, shape index: {}]
  %s1 = inlined_call_operand.hbm [shape: f32[16,32], index: 1, kind: input, shape index: {}]
  %s2 = inlined_call_operand.vmem [shape: f32[1,16], index: 2, kind: input, shape index: {}]
  %s3 = inlined_call_operand.hbm [shape: f32[8,16], index: 3, kind: output, shape index: {}]
  %s4 = sld [smem:[#allocation0]]
  $region30: #{linear_layer.1} parent=0
    _
  %s6 = ssub.s32 1, %s4
  %s7 = scalar_select 0, %s6, %s4
  $region1: #{linear_layer.1} parent=0
    #allocation2 [shape = 'u8[4096]{0}', space=vmem, size = 0x1000, scoped, tag = 'input window, operand 0, single buffered']
    #allocation3 [shape = 's32[1]{0}', space=sflag, size = 0x4, scoped, tag = 'scoped memory for linear_layer.1']
    #allocation4 [shape = 's32[1]{0}', space=sflag, size = 0x4, scoped, tag = 'scoped memory for linear_layer.1']
    #allocation5 [shape = 'u8[8192]{0}', space=vmem, size = 0x2000, scoped, tag = 'input window, operand 1, single buffered']
    #allocation6 [shape = 's32[1]{0}', space=sflag, size = 0x4, scoped, tag = 'scoped memory for linear_layer.1']
    #allocation7 [shape = 'u8[4096]{0}', space=vmem, size = 0x1000, scoped, tag = 'output window, operand 0, single buffered']
    %8 = vsyncpa [#allocation3], 0
    %9 = vsyncpa [#allocation6], 0
    %10 = vsyncpa [#allocation4], 0
    // Predicated region
    $region2: #{linear_layer.1} parent=1 // pred_check
      _
    $region3: #{linear_layer.1} parent=1 // pred_check_branch
      %12 = sbr.rel (0) target = $region5
    $region4: #{linear_layer.1} parent=1 // pred_region
      %s14 = ssub.s32 128, 128
      %15 = vsyncadd [#allocation3], %s14
      %s17 = sshll.u32 [#allocation2], 4
      %s18 = int_to_ptr.vmem [resolvable:$true] %s17
      %20 = dma.hbm_to_vmem [thread:$0]  %s0, 128, %s18, [#allocation3]
    $region5: #{linear_layer.1} parent=1 // pred_fallthru
      _
    // Predicated region
    $region6: #{linear_layer.1} parent=1 // pred_check
      _
    $region7: #{linear_layer.1} parent=1 // pred_check_branch
      %22 = sbr.rel (0) target = $region9
    $region8: #{linear_layer.1} parent=1 // pred_region
      %s24 = ssub.s32 256, 256
      %25 = vsyncadd [#allocation6], %s24
      %s26 = sshll.u32 [#allocation5], 4
      %s27 = int_to_ptr.vmem [resolvable:$true] %s26
      %32 = dma.hbm_to_vmem [thread:$0]  %s1, 256, %s27, [#allocation6], 128, 128, 8
    $region9: #{linear_layer.1} parent=1 // pred_fallthru
      _
    // Predicated region
    $region10: #{linear_layer.1} parent=1 // pred_check
      _
    $region11: #{linear_layer.1} parent=1 // pred_check_branch
      %34 = sbr.rel (0) target = $region13
    $region12: #{linear_layer.1} parent=1 // pred_region
      _
    $region13: #{linear_layer.1} parent=1 // pred_fallthru
      _
    // Predicated region
    $region14: #{linear_layer.1} parent=1 // pred_check
      _
    $region15: #{linear_layer.1} parent=1 // pred_check_branch
      %36 = sbr.rel (0) target = $region17
    $region16: #{linear_layer.1} parent=1 // pred_region
      %37 = dma.done [#allocation3], 128
    $region17: #{linear_layer.1} parent=1 // pred_fallthru
      _
    // Predicated region
    $region18: #{linear_layer.1} parent=1 // pred_check
      _
    $region19: #{linear_layer.1} parent=1 // pred_check_branch
      %39 = sbr.rel (0) target = $region21
    $region20: #{linear_layer.1} parent=1 // pred_region
      %40 = dma.done [#allocation6], 256
    $region21: #{linear_layer.1} parent=1 // pred_fallthru
      _
    %v41 = vld [vmem:[#allocation2] sm:$0xff]
    %v42 = vld [vmem:[#allocation5] sm:$0xff]
    %v43 = vld [vmem:[#allocation5 + $0x8] sm:$0xff]
    %v44 = vld [vmem:[%s2] sm:$0x1]
    %v46 = vlaneseq
    %v47 = vshrl.u32 %v46, 7
    %v48 = vsub.s32 0, %v47
    %v49 = vrot.slane %v44, %v48
    %vm51 = vcmask 261120
    %v53 = vsel %vm51, %v41, 0
    %v56 = vsel %vm51, %v42, 0
    %v59 = vsel %vm51, %v43, 0
    %61 = vmatprep.subr.mxu0 0.0
    %62 = vmatpush1.xpose.msra.mxu0 0.0
    %63 = vmatprep.subr.mxu0 0.0
    %64 = vmatpush1.xpose.msra.mxu0 0.0
    %65 = vmatprep.subr.mxu0 0.0
    %66 = vmatpush1.xpose.msra.mxu0 0.0
    %67 = vmatprep.subr.mxu0 0.0
    %68 = vmatpush1.xpose.msra.mxu0 0.0
    %69 = vmatprep.subr.mxu0 0.0
    %70 = vmatpush1.xpose.msra.mxu0 0.0
    %71 = vmatprep.subr.mxu0 0.0
    %72 = vmatpush1.xpose.msra.mxu0 0.0
    %73 = vmatprep.subr.mxu0 0.0
    %74 = vmatpush1.xpose.msra.mxu0 0.0
    %75 = vmatprep.subr.mxu0 0.0
    %76 = vmatpush1.xpose.msra.mxu0 0.0
    %77 = vmatprep.subr.mxu0 0.0
    %78 = vmatpush1.xpose.msra.mxu0 0.0
    %79 = vmatprep.subr.mxu0 0.0
    %80 = vmatpush1.xpose.msra.mxu0 0.0
    %81 = vmatprep.subr.mxu0 0.0
    %82 = vmatpush1.xpose.msra.mxu0 0.0
    %83 = vmatprep.subr.mxu0 0.0
    %84 = vmatpush1.xpose.msra.mxu0 0.0
    %85 = vmatprep.subr.mxu0 0.0
    %86 = vmatpush1.xpose.msra.mxu0 0.0
    %87 = vmatprep.subr.mxu0 0.0
    %88 = vmatpush1.xpose.msra.mxu0 0.0
    %89 = vmatprep.subr.mxu0 0.0
    %90 = vmatpush1.xpose.msra.mxu0 %v59
    %91 = vmatprep.subr.mxu0 0.0
    %92 = vmatpush1.xpose.msra.mxu0 %v56
    %93 = vmatprep.subr.mxu0 0.0
    %94 = vmatpush2.xpose.msra.mxu0 0.0
    %95 = vmatprep.subr.mxu0 0.0
    %96 = vmatpush2.xpose.msra.mxu0 0.0
    %97 = vmatprep.subr.mxu0 0.0
    %98 = vmatpush2.xpose.msra.mxu0 0.0
    %99 = vmatprep.subr.mxu0 0.0
    %100 = vmatpush2.xpose.msra.mxu0 0.0
    %101 = vmatprep.subr.mxu0 0.0
    %102 = vmatpush2.xpose.msra.mxu0 0.0
    %103 = vmatprep.subr.mxu0 0.0
    %104 = vmatpush2.xpose.msra.mxu0 0.0
    %105 = vmatprep.subr.mxu0 0.0
    %106 = vmatpush2.xpose.msra.mxu0 0.0
    %107 = vmatprep.subr.mxu0 0.0
    %108 = vmatpush2.xpose.msra.mxu0 0.0
    %109 = vmatprep.subr.mxu0 0.0
    %110 = vmatpush2.xpose.msra.mxu0 0.0
    %111 = vmatprep.subr.mxu0 0.0
    %112 = vmatpush2.xpose.msra.mxu0 0.0
    %113 = vmatprep.subr.mxu0 0.0
    %114 = vmatpush2.xpose.msra.mxu0 0.0
    %115 = vmatprep.subr.mxu0 0.0
    %116 = vmatpush2.xpose.msra.mxu0 0.0
    %117 = vmatprep.subr.mxu0 0.0
    %118 = vmatpush2.xpose.msra.mxu0 0.0
    %119 = vmatprep.subr.mxu0 0.0
    %120 = vmatpush2.xpose.msra.mxu0 0.0
    %121 = vmatprep.subr.mxu0 0.0
    %122 = vmatpush2.xpose.msra.mxu0 0.0
    %123 = vmatprep.subr.mxu0 0.0
    %124 = vmatpush2.xpose.msra.mxu0 0.0
    %125 = vmatprep.mubr.f32.mxu0 0.0
    %126 = vmatmul.mubr.f32.gmra.mxu0 %v53
    %v127 = vpop.f32.mrf.mxu0
    %v128 = vadd.f32 %v49, %v127
    %v129 = vpop.f32.mrf.mxu0
    %130 = vdwg.mxu0
    %v131 = vmax.f32 %v128, 0.0
    %vm132 = vcmask 130048
    %133 = vst.msk [vmem:[#allocation7] sm:$0xff] %vm132, %v131
    // Predicated region
    $region22: #{linear_layer.1} parent=1 // pred_check
      _
    $region23: #{linear_layer.1} parent=1 // pred_check_branch
      %135 = sbr.rel (0) target = $region25
    $region24: #{linear_layer.1} parent=1 // pred_region
      %s137 = ssub.s32 128, 128
      %138 = vsyncadd [#allocation4], %s137
      %s140 = sshll.u32 [#allocation7], 4
      %s141 = int_to_ptr.vmem [resolvable:$true] %s140
      %143 = dma.vmem_to_hbm [thread:$0]  %s141, 128, %s3, [#allocation4]
    $region25: #{linear_layer.1} parent=1 // pred_fallthru
      _
    // Predicated region
    $region26: #{linear_layer.1} parent=1 // pred_check
      _
    $region27: #{linear_layer.1} parent=1 // pred_check_branch
      %145 = sbr.rel (0) target = $region29
    $region28: #{linear_layer.1} parent=1 // pred_region
      %146 = dma.done [#allocation4], 128
    $region29: #{linear_layer.1} parent=1 // pred_fallthru
      _
    %147 = vsyncpa [#allocation3], 1
    %148 = vsyncpa [#allocation6], 1
    %149 = vsyncpa [#allocation4], 1

</llo_original>
